<compile_context>
chip_gen: v6e
topology: v6e:2x2x1
jax: 0.10.0
libtpu: 0.0.40
codegen_flags: <defaults>
</compile_context>

<pallas_src>
import jax
import jax.numpy as jnp
import numpy as np
from jax.experimental import pallas as pl
from jax.experimental.pallas import tpu as pltpu


_TM_MAX = 2048  # rows of the (., 128) f32 slab -> 1 MiB per buffer


def _fused_copy_kernel(u_ref, i_ref, u_out_ref, i_out_ref):
    u_out_ref[...] = u_ref[...]
    i_out_ref[...] = i_ref[...]


def _lane_dense_view(x):
    """(N, D) -> (N*D/128, 128) slab when exact; else the original view."""
    r, c = x.shape
    if (r * c) % 128 == 0:
        return x.reshape((r * c) // 128, 128)
    # TODO(synk): pad the lane dim to 128 for embedding dims where N*D is not
    # a multiple of 128 (avoids masked vst.msk partial stores).
    return x


def _tile_rows(view_shape):
    """Row-tile for the slab: fixed 1 MiB block, or full extent if smaller."""
    r, c = view_shape
    if c % 128 != 0:
        # Non-lane-dense fallback: full-array block is the only always-legal
        # shape here (never triggered for the shapes used in this script).
        return r
    if r <= _TM_MAX:
        return r              # full extent: always a legal block shape
    return _TM_MAX            # multiple of 8; ragged last block handled by cdiv grid


def mf_forward_pallas(adj, user_emb, item_emb):
    """Opt-in Pallas path: one fused copy kernel over both embedding tables."""
    del adj  # MF.forward never reads the adjacency -> never stream it.

    u_shape, i_shape = user_emb.shape, item_emb.shape
    u_view = _lane_dense_view(user_emb)
    i_view = _lane_dense_view(item_emb)
    (ru, cu), (ri, ci) = u_view.shape, i_view.shape

    tmu, tmi = _tile_rows(u_view.shape), _tile_rows(i_view.shape)
    gu, gi = pl.cdiv(ru, tmu), pl.cdiv(ri, tmi)
    grid = (max(gu, gi),)

    # Clamped block indices: if one table has fewer tiles, its last block is
    # (idempotently) revisited on the trailing grid steps.
    def u_map(s):
        return (jnp.minimum(s, gu - 1), 0)

    def i_map(s):
        return (jnp.minimum(s, gi - 1), 0)

    # Megacore-safe semantics: only mark parallel when no block is revisited
    # across grid steps (gu == gi); otherwise keep the axis arbitrary.
    semantics = ("parallel",) if gu == gi else ("arbitrary",)

    bytes_accessed = 2 * (
        user_emb.size * user_emb.dtype.itemsize
        + item_emb.size * item_emb.dtype.itemsize
    )

    u_out, i_out = pl.pallas_call(
        _fused_copy_kernel,
        grid=grid,
        in_specs=[
            pl.BlockSpec((tmu, cu), u_map),
            pl.BlockSpec((tmi, ci), i_map),
        ],
        out_specs=[
            pl.BlockSpec((tmu, cu), u_map),
            pl.BlockSpec((tmi, ci), i_map),
        ],
        out_shape=(
            jax.ShapeDtypeStruct((ru, cu), u_view.dtype),
            jax.ShapeDtypeStruct((ri, ci), i_view.dtype),
        ),
        compiler_params=pltpu.CompilerParams(
            dimension_semantics=semantics,
            vmem_limit_bytes=32 * 1024 * 1024,
        ),
        cost_estimate=pl.CostEstimate(
            flops=0, transcendentals=0, bytes_accessed=bytes_accessed
        ),
    )(u_view, i_view)

    return u_out.reshape(u_shape), i_out.reshape(i_shape)


def mf_forward(adj, user_emb, item_emb, *, use_pallas_copy=False):
    """Replicates MF.forward(adj): returns (u_g_embeddings, i_g_embeddings).

    Default path is the zero-cost pass-through (per performance review the
    kernel does no compute, so not launching it removes 100% of its cost).
    Set use_pallas_copy=True to route through the fused Pallas copy kernel.
    """
    del adj
    if not use_pallas_copy:
        return user_emb, item_emb
    return mf_forward_pallas(None, user_emb, item_emb)


def mf_forward_ref(adj, user_emb, item_emb):
    """Pure-JAX reference mirroring the PyTorch module."""
    del adj
    return user_emb, item_emb


def _xavier_uniform(key, shape):
    fan_in, fan_out = shape
    bound = float(np.sqrt(6.0 / (fan_in + fan_out)))
    return jax.random.uniform(key, shape, jnp.float32, -bound, bound)


if __name__ == "__main__":
    # Small deterministic config consistent with the module.
    n_users, n_items = 48, 80
    embedding_dim = 32
    n_nodes = n_users + n_items

    key = jax.random.PRNGKey(0)
    k_user, k_item, k_adj = jax.random.split(key, 3)

    # nn.Embedding weights with xavier_uniform_ init (as in MF._init_weight_).
    user_emb = _xavier_uniform(k_user, (n_users, embedding_dim))
    item_emb = _xavier_uniform(k_item, (n_items, embedding_dim))

    # The adjacency the PyTorch forward receives (and ignores).
    adj = jax.random.uniform(k_adj, (n_nodes, n_nodes), jnp.float32) / n_nodes

    # Default (recommended) path: zero-cost pass-through.
    u_fast, i_fast = mf_forward(adj, user_emb, item_emb)

    # Opt-in Pallas path: single fused copy kernel, run once and verified.
    u_g, i_g = mf_forward(adj, user_emb, item_emb, use_pallas_copy=True)
    jax.block_until_ready((u_g, i_g))

    u_ref, i_ref = mf_forward_ref(adj, user_emb, item_emb)
    np.testing.assert_array_equal(np.asarray(u_fast), np.asarray(u_ref))
    np.testing.assert_array_equal(np.asarray(i_fast), np.asarray(i_ref))
    np.testing.assert_array_equal(np.asarray(u_g), np.asarray(u_ref))
    np.testing.assert_array_equal(np.asarray(i_g), np.asarray(i_ref))

    assert u_g.shape == (n_users, embedding_dim)
    assert i_g.shape == (n_items, embedding_dim)
    print("KERNEL_OK")
</pallas_src>

<mosaic_0001>
module attributes {stable_mosaic.version = 11 : i64} {
  func.func @_fused_copy_kernel(%arg0: i32, %arg1: memref<12x128xf32, #tpu.memory_space<vmem>>, %arg2: memref<20x128xf32, #tpu.memory_space<vmem>>, %arg3: memref<12x128xf32, #tpu.memory_space<vmem>>, %arg4: memref<20x128xf32, #tpu.memory_space<vmem>>) attributes {dimension_semantics = [#tpu.dimension_semantics<parallel>], iteration_bounds = array<i64: 1>, scalar_prefetch = 0 : i64, scratch_operands = 0 : i64, tpu.core_type = #tpu.core_type<tc>, window_params = [{transform_indices = @transform_0, window_bounds = array<i64: 12, 128>}, {transform_indices = @transform_1, window_bounds = array<i64: 20, 128>}, {transform_indices = @transform_2, window_bounds = array<i64: 12, 128>}, {transform_indices = @transform_3, window_bounds = array<i64: 20, 128>}]} {
    %c0 = arith.constant 0 : index
    %c0_0 = arith.constant 0 : index
    %0 = vector.load %arg1[%c0, %c0_0] : memref<12x128xf32, #tpu.memory_space<vmem>>, vector<12x128xf32>
    %c0_1 = arith.constant 0 : index
    %c0_2 = arith.constant 0 : index
    %1 = vector.load %arg3[%c0_1, %c0_2] : memref<12x128xf32, #tpu.memory_space<vmem>>, vector<12x128xf32>
    tpu.vector_store %arg3[%c0_1, %c0_2], %0 {strides = array<i32>} : memref<12x128xf32, #tpu.memory_space<vmem>>, vector<12x128xf32>,
    %c0_3 = arith.constant 0 : index
    %c0_4 = arith.constant 0 : index
    %2 = vector.load %arg2[%c0_3, %c0_4] : memref<20x128xf32, #tpu.memory_space<vmem>>, vector<20x128xf32>
    %c0_5 = arith.constant 0 : index
    %c0_6 = arith.constant 0 : index
    %3 = vector.load %arg4[%c0_5, %c0_6] : memref<20x128xf32, #tpu.memory_space<vmem>>, vector<20x128xf32>
    tpu.vector_store %arg4[%c0_5, %c0_6], %2 {strides = array<i32>} : memref<20x128xf32, #tpu.memory_space<vmem>>, vector<20x128xf32>,
    return
  }
  func.func @transform_0(%arg0: i32) -> (i32, i32) {
    %c0_i32 = arith.constant 0 : i32
    %0 = arith.minsi %arg0, %c0_i32 : i32
    %c0_i32_0 = arith.constant 0 : i32
    %c0_i32_1 = arith.constant 0 : i32
    return %0, %c0_i32_0 : i32, i32
  }
  func.func @transform_1(%arg0: i32) -> (i32, i32) {
    %c0_i32 = arith.constant 0 : i32
    %0 = arith.minsi %arg0, %c0_i32 : i32
    %c0_i32_0 = arith.constant 0 : i32
    %c0_i32_1 = arith.constant 0 : i32
    return %0, %c0_i32_0 : i32, i32
  }
  func.func @transform_2(%arg0: i32) -> (i32, i32) {
    %c0_i32 = arith.constant 0 : i32
    %0 = arith.minsi %arg0, %c0_i32 : i32
    %c0_i32_0 = arith.constant 0 : i32
    %c0_i32_1 = arith.constant 0 : i32
    return %0, %c0_i32_0 : i32, i32
  }
  func.func @transform_3(%arg0: i32) -> (i32, i32) {
    %c0_i32 = arith.constant 0 : i32
    %0 = arith.minsi %arg0, %c0_i32 : i32
    %c0_i32_0 = arith.constant 0 : i32
    %c0_i32_1 = arith.constant 0 : i32
    return %0, %c0_i32_0 : i32, i32
  }
}

</mosaic_0001>

<llo_original>
// kernel: tpu_custom_call.1
$region0: #{tpu_custom_call.1}
  #allocation0 [shape = 'u32[]', space=smem, size = 0x4, offset = 0x4, fixed_abs, tag = 'smem constant byte address 0x4 - core index']
  #allocation1 [shape = 'u32[144,128]{1,0:T(1,128)}', space=vmem, size = 0x12000, scoped, tag = 'internal scratch']
  %s0 = inlined_call_operand.hbm [shape: f32[12,128], index: 0, kind: input, shape index: {}]
  %s1 = inlined_call_operand.hbm [shape: f32[20,128], index: 1, kind: input, shape index: {}]
  %s2 = inlined_call_operand.hbm [shape: f32[12,128], index: 2, kind: output, shape index: {0}]
  %s3 = inlined_call_operand.hbm [shape: f32[20,128], index: 3, kind: output, shape index: {1}]
  %4 = xla_tuple %s2, %s3
  %s5 = sld [smem:[#allocation0]]
  $region34: #{tpu_custom_call.1} parent=0
    _
  %s7 = ssub.s32 1, %s5
  %s8 = scalar_select 0, %s7, %s5
  $region1: #{tpu_custom_call.1} parent=0
    #allocation2 [shape = 'u8[8192]{0}', space=vmem, size = 0x2000, scoped, tag = 'input window, operand 0, single buffered']
    #allocation3 [shape = 's32[1]{0}', space=sflag, size = 0x4, scoped, tag = 'scoped memory for tpu_custom_call.1']
    #allocation4 [shape = 's32[1]{0}', space=sflag, size = 0x4, scoped, tag = 'scoped memory for tpu_custom_call.1']
    #allocation5 [shape = 'u8[12288]{0}', space=vmem, size = 0x3000, scoped, tag = 'input window, operand 1, single buffered']
    #allocation6 [shape = 's32[1]{0}', space=sflag, size = 0x4, scoped, tag = 'scoped memory for tpu_custom_call.1']
    #allocation7 [shape = 'u8[8192]{0}', space=vmem, size = 0x2000, scoped, tag = 'output window, operand 0, single buffered']
    #allocation8 [shape = 'u8[12288]{0}', space=vmem, size = 0x3000, scoped, tag = 'output window, operand 1, single buffered']
    #allocation9 [shape = 's32[1]{0}', space=sflag, size = 0x4, scoped, tag = 'scoped memory for tpu_custom_call.1']
    %9 = vsyncpa [#allocation3], 0
    %10 = vsyncpa [#allocation6], 0
    %11 = vsyncpa [#allocation4], 0
    %12 = vsyncpa [#allocation9], 0
    // Predicated region
    $region2: #{tpu_custom_call.1} parent=1 // pred_check
      _
    $region3: #{tpu_custom_call.1} parent=1 // pred_check_branch
      %14 = sbr.rel (0) target = $region5
    $region4: #{tpu_custom_call.1} parent=1 // pred_region
      %s16 = ssub.s32 256, 256
      %17 = vsyncadd [#allocation3], %s16
      %s18 = sshll.u32 [#allocation2], 4
      %s19 = int_to_ptr.vmem [resolvable:$true] %s18
      %24 = dma.hbm_to_vmem [thread:$0]  %s0, 256, %s19, [#allocation3], 128, 128, 8
    $region5: #{tpu_custom_call.1} parent=1 // pred_fallthru
      _
    // Predicated region
    $region6: #{tpu_custom_call.1} parent=1 // pred_check
      _
    $region7: #{tpu_custom_call.1} parent=1 // pred_check_branch
      %26 = sbr.rel (0) target = $region9
    $region8: #{tpu_custom_call.1} parent=1 // pred_region
      %s28 = ssub.s32 384, 384
      %29 = vsyncadd [#allocation6], %s28
      %s30 = sshll.u32 [#allocation5], 4
      %s31 = int_to_ptr.vmem [resolvable:$true] %s30
      %36 = dma.hbm_to_vmem [thread:$0]  %s1, 384, %s31, [#allocation6], 128, 128, 8
    $region9: #{tpu_custom_call.1} parent=1 // pred_fallthru
      _
    // Predicated region
    $region10: #{tpu_custom_call.1} parent=1 // pred_check
      _
    $region11: #{tpu_custom_call.1} parent=1 // pred_check_branch
      %38 = sbr.rel (0) target = $region13
    $region12: #{tpu_custom_call.1} parent=1 // pred_region
      %39 = dma.done [#allocation3], 256
    $region13: #{tpu_custom_call.1} parent=1 // pred_fallthru
      _
    // Predicated region
    $region14: #{tpu_custom_call.1} parent=1 // pred_check
      _
    $region15: #{tpu_custom_call.1} parent=1 // pred_check_branch
      %41 = sbr.rel (0) target = $region17
    $region16: #{tpu_custom_call.1} parent=1 // pred_region
      %42 = dma.done [#allocation6], 384
    $region17: #{tpu_custom_call.1} parent=1 // pred_fallthru
      _
    %v43 = vld [vmem:[#allocation2] sm:$0xff]
    %v44 = vld [vmem:[#allocation2 + $0x8] sm:$0xf]
    %45 = vst [vmem:[#allocation7] sm:$0xff] %v43
    %46 = vst [vmem:[#allocation7 + $0x8] sm:$0xf] %v44
    %v47 = vld [vmem:[#allocation5] sm:$0xff]
    %v48 = vld [vmem:[#allocation5 + $0x8] sm:$0xff]
    %v49 = vld [vmem:[#allocation5 + $0x10] sm:$0xf]
    %50 = vst [vmem:[#allocation8] sm:$0xff] %v47
    %51 = vst [vmem:[#allocation8 + $0x8] sm:$0xff] %v48
    %52 = vst [vmem:[#allocation8 + $0x10] sm:$0xf] %v49
    // Predicated region
    $region18: #{tpu_custom_call.1} parent=1 // pred_check
      _
    $region19: #{tpu_custom_call.1} parent=1 // pred_check_branch
      %54 = sbr.rel (0) target = $region21
    $region20: #{tpu_custom_call.1} parent=1 // pred_region
      %s56 = ssub.s32 256, 256
      %57 = vsyncadd [#allocation4], %s56
      %s58 = sshll.u32 [#allocation7], 4
      %s59 = int_to_ptr.vmem [resolvable:$true] %s58
      %64 = dma.vmem_to_hbm [thread:$0]  %s59, 256, %s2, [#allocation4], 128, 128, 8
    $region21: #{tpu_custom_call.1} parent=1 // pred_fallthru
      _
    // Predicated region
    $region22: #{tpu_custom_call.1} parent=1 // pred_check
      _
    $region23: #{tpu_custom_call.1} parent=1 // pred_check_branch
      %66 = sbr.rel (0) target = $region25
    $region24: #{tpu_custom_call.1} parent=1 // pred_region
      %s68 = ssub.s32 384, 384
      %69 = vsyncadd [#allocation9], %s68
      %s70 = sshll.u32 [#allocation8], 4
      %s71 = int_to_ptr.vmem [resolvable:$true] %s70
      %76 = dma.vmem_to_hbm [thread:$0]  %s71, 384, %s3, [#allocation9], 128, 128, 8
    $region25: #{tpu_custom_call.1} parent=1 // pred_fallthru
      _
    // Predicated region
    $region26: #{tpu_custom_call.1} parent=1 // pred_check
      _
    $region27: #{tpu_custom_call.1} parent=1 // pred_check_branch
      %78 = sbr.rel (0) target = $region29
    $region28: #{tpu_custom_call.1} parent=1 // pred_region
      %79 = dma.done [#allocation4], 256
    $region29: #{tpu_custom_call.1} parent=1 // pred_fallthru
      _
    // Predicated region
    $region30: #{tpu_custom_call.1} parent=1 // pred_check
      _
    $region31: #{tpu_custom_call.1} parent=1 // pred_check_branch
      %81 = sbr.rel (0) target = $region33
    $region32: #{tpu_custom_call.1} parent=1 // pred_region
      %82 = dma.done [#allocation9], 384
    $region33: #{tpu_custom_call.1} parent=1 // pred_fallthru
      _
    %83 = vsyncpa [#allocation3], 1
    %84 = vsyncpa [#allocation6], 1
    %85 = vsyncpa [#allocation4], 1
    %86 = vsyncpa [#allocation9], 1

</llo_original>
